<compile_context>
chip_gen: v6e
topology: v6e:2x2x1
jax: 0.10.0
libtpu: 0.0.40
codegen_flags: <defaults>
</compile_context>

<pallas_src>
import functools

import jax
import jax.numpy as jnp
from jax.experimental import pallas as pl
from jax.experimental.pallas import tpu as pltpu


def _luong_attention_kernel(values_ref, keys_ref, query_ref, wq_ref, wc_ref,
                            out_ref, m_sc, l_sc, acc_sc):
    s_idx = pl.program_id(1)
    s_last = pl.num_programs(1) - 1

    # ---- init online-softmax state at the first src-len block ---------------
    @pl.when(s_idx == 0)
    def _():
        m_sc[...] = jnp.full(m_sc.shape, -jnp.inf, dtype=jnp.float32)
        l_sc[...] = jnp.zeros(l_sc.shape, dtype=jnp.float32)
        acc_sc[...] = jnp.zeros(acc_sc.shape, dtype=jnp.float32)

    q = query_ref[...]                       # [bB, 1, D]   (streamed dtype)
    keys = keys_ref[...]                     # [bB, bS, D]
    values = values_ref[...]                 # [bB, bS, E]

    # Scores for this src-len block (MXU, f32 accumulation), squeezed to a
    # sublane-dense [bB, bS] layout for the softmax math.
    e = jnp.einsum("bqd,bkd->bqk", q, keys,
                   preferred_element_type=jnp.float32)[:, 0, :]    # [bB, bS]

    # ---- online softmax update (all f32: no bf16 VPU/EUP on v5e) ------------
    m_prev = m_sc[...]                                             # [bB, 1]
    m_new = jnp.maximum(m_prev, jnp.max(e, axis=-1, keepdims=True))
    corr = jnp.exp(m_prev - m_new)                                 # [bB, 1]
    p = jnp.exp(e - m_new)                                         # [bB, bS]

    l_sc[...] = corr * l_sc[...] + jnp.sum(p, axis=-1, keepdims=True)
    ctx = jnp.einsum("bqk,bkd->bqd",
                     p[:, None, :].astype(values.dtype), values,
                     preferred_element_type=jnp.float32)[:, 0, :]  # [bB, E]
    acc_sc[...] = corr * acc_sc[...] + ctx
    m_sc[...] = m_new

    # ---- finalize: normalize, project, tanh ----------------------------------
    @pl.when(s_idx == s_last)
    def _():
        inv_l = pl.reciprocal(l_sc[...], approx=False)             # [bB, 1]
        c = acc_sc[...] * inv_l                                    # [bB, E]
        q2 = q[:, 0, :].astype(jnp.float32)                        # [bB, D]
        # concat([query, c]) @ W.T  ==  query @ W_q + c @ W_c   (MXU)
        v = jnp.dot(q2, wq_ref[...], preferred_element_type=jnp.float32)
        v = v + jnp.dot(c, wc_ref[...], preferred_element_type=jnp.float32)
        # NOTE: out last dim D may be < 128 (masked partial stores); it is
        # written once per batch block so the cost is negligible here.
        out_ref[...] = jnp.tanh(v).astype(out_ref.dtype)


def _pick_tile(total, target, align):
    """Largest multiple of `align` that divides `total` and is <= `target`,
    falling back to the full extent (always a legal block size)."""
    if total <= target:
        return total
    t = max(align, (target // align) * align)
    while t > align and total % t != 0:
        t -= align
    return t if total % t == 0 else total


def prepare_projection(w_proj):
    """One-time split of the PyTorch Linear weight [D, E+D] into W_q [D, D]
    (acts on query) and W_c [E, D] (acts on context). Hoisted out of the
    per-decoder-step path so the transpose/slices never hit HBM per call."""
    d = w_proj.shape[0]
    w_t = jnp.transpose(w_proj).astype(jnp.float32)   # [D+E, D]
    return w_t[:d, :], w_t[d:, :]


@functools.partial(jax.jit, static_argnames=("stream_dtype",))
def luong_attention(values, keys, query, w_q, w_c, *, stream_dtype=None):
    """values [B,S,E], keys [B,S,D], query [B,D]; w_q [D,D], w_c [E,D] (f32)."""
    B, S, E = values.shape
    D = query.shape[-1]

    if stream_dtype is not None:               # bf16 streaming: halves HBM bytes
        values = values.astype(stream_dtype)
        keys = keys.astype(stream_dtype)
        query = query.astype(stream_dtype)
    query3 = query.reshape(B, 1, D)             # explicit length-1 "query" axis

    itemsize = jnp.dtype(values.dtype).itemsize
    # Batch tile: sublane-aligned (or full B); also the M dim of the projection.
    bB = _pick_tile(B, 128, 8)
    # Src-len tile: keep streamed keys+values ~4 MiB per grid step so double
    # buffering fits scoped-VMEM defaults on v5e (16 MiB) and v6e/v7x (32 MiB).
    per_row_bytes = max(1, bB * (E + D) * itemsize)
    bS = _pick_tile(S, max(8, (4 << 20) // per_row_bytes), 8)

    grid = (B // bB, S // bS)

    vmem_est = (
        2 * bB * bS * (E + D) * itemsize      # double-buffered keys+values tiles
        + 2 * bB * D * itemsize               # query tiles
        + 2 * (D * D + E * D) * 4             # resident projection weights
        + 2 * bB * D * 4                      # output tiles
        + bB * (E + 2) * 4                    # online-softmax scratch
    )
    vmem_limit = int(min(48 << 20, max(2 * vmem_est, 16 << 20)))

    grid_spec = pltpu.PrefetchScalarGridSpec(
        num_scalar_prefetch=0,
        grid=grid,
        in_specs=[
            pl.BlockSpec((bB, bS, E), lambda b, s: (b, s, 0)),   # values
            pl.BlockSpec((bB, bS, D), lambda b, s: (b, s, 0)),   # keys
            pl.BlockSpec((bB, 1, D), lambda b, s: (b, 0, 0)),    # query (resident)
            pl.BlockSpec((D, D), lambda b, s: (0, 0)),           # W_q (resident)
            pl.BlockSpec((E, D), lambda b, s: (0, 0)),           # W_c (resident)
        ],
        out_specs=pl.BlockSpec((bB, D), lambda b, s: (b, 0)),
        scratch_shapes=[
            pltpu.VMEM((bB, 1), jnp.float32),   # running max  m
            pltpu.VMEM((bB, 1), jnp.float32),   # running sum  l
            pltpu.VMEM((bB, E), jnp.float32),   # context accumulator
        ],
    )

    return pl.pallas_call(
        _luong_attention_kernel,
        out_shape=jax.ShapeDtypeStruct((B, D), jnp.float32),
        grid_spec=grid_spec,
        compiler_params=pltpu.CompilerParams(
            dimension_semantics=("parallel", "arbitrary"),
            vmem_limit_bytes=vmem_limit,
        ),
    )(values, keys, query3, w_q, w_c)


def luong_attention_ref(values, keys, query, w_proj):
    """Pure-JAX reference mirroring the PyTorch forward."""
    e = jnp.einsum("bsd,bd->bs", keys, query)
    alpha = jax.nn.softmax(e, axis=1)
    c = jnp.einsum("bs,bse->be", alpha, values)
    u = jnp.concatenate([query, c], axis=1)
    return jnp.tanh(u @ w_proj.T)


if __name__ == "__main__":
    B, S = 2, 8
    ENC_H, DEC_H = 32, 32

    key = jax.random.PRNGKey(0)
    k_values, k_keys, k_query, k_w = jax.random.split(key, 4)

    values = jax.random.normal(k_values, (B, S, ENC_H), dtype=jnp.float32)
    keys = jax.random.normal(k_keys, (B, S, DEC_H), dtype=jnp.float32)
    query = jax.random.normal(k_query, (B, DEC_H), dtype=jnp.float32)
    # No-bias projection weight in PyTorch layout [D, E+D].
    w_proj = jax.random.normal(k_w, (DEC_H, ENC_H + DEC_H), dtype=jnp.float32) * 0.1

    # One-time weight prep (hoisted out of the per-step path).
    w_q, w_c = prepare_projection(w_proj)

    ref = luong_attention_ref(values, keys, query, w_proj)

    # f32 path
    out = jax.block_until_ready(luong_attention(values, keys, query, w_q, w_c))
    assert out.shape == (B, DEC_H)
    assert jnp.allclose(out, ref, atol=1e-4, rtol=1e-4), "f32 mismatch vs reference"

    # bf16-streamed path (HBM-bandwidth win on v6e/v7x); loose sanity tolerance.
    out_bf16 = jax.block_until_ready(
        luong_attention(values, keys, query, w_q, w_c, stream_dtype=jnp.bfloat16))
    assert jnp.allclose(out_bf16, ref, atol=1e-1, rtol=1e-1), "bf16 mismatch vs reference"

    print("KERNEL_OK")
</pallas_src>

<mosaic_0001>
module attributes {stable_mosaic.version = 11 : i64} {
  func.func @_luong_attention_kernel(%arg0: i32, %arg1: i32, %arg2: memref<2x8x32xf32, #tpu.memory_space<vmem>>, %arg3: memref<2x8x32xf32, #tpu.memory_space<vmem>>, %arg4: memref<2x1x32xf32, #tpu.memory_space<vmem>>, %arg5: memref<32x32xf32, #tpu.memory_space<vmem>>, %arg6: memref<32x32xf32, #tpu.memory_space<vmem>>, %arg7: memref<2x32xf32, #tpu.memory_space<vmem>>, %arg8: memref<2x1xf32, #tpu.memory_space<vmem>>, %arg9: memref<2x1xf32, #tpu.memory_space<vmem>>, %arg10: memref<2x32xf32, #tpu.memory_space<vmem>>) attributes {dimension_semantics = [#tpu.dimension_semantics<parallel>, #tpu.dimension_semantics<arbitrary>], iteration_bounds = array<i64: 1, 1>, scalar_prefetch = 0 : i64, scratch_operands = 3 : i64, tpu.core_type = #tpu.core_type<tc>, window_params = [{transform_indices = @transform_0, window_bounds = array<i64: 2, 8, 32>}, {transform_indices = @transform_1, window_bounds = array<i64: 2, 8, 32>}, {transform_indices = @transform_2, window_bounds = array<i64: 2, 1, 32>}, {pipeline_mode = #tpu.pipeline_mode<synchronous>, transform_indices = @transform_3, window_bounds = array<i64: 32, 32>}, {pipeline_mode = #tpu.pipeline_mode<synchronous>, transform_indices = @transform_4, window_bounds = array<i64: 32, 32>}, {transform_indices = @transform_5, window_bounds = array<i64: 2, 32>}]} {
    %c0_i32 = arith.constant 0 : i32
    %0 = arith.cmpi eq, %arg1, %c0_i32 : i32
    %1 = arith.extui %0 : i1 to i32
    %c0_i32_0 = arith.constant 0 : i32
    %2 = arith.cmpi ne, %1, %c0_i32_0 : i32
    scf.if %2 {
      %cst_26 = arith.constant 0xFF800000 : f32
      %35 = vector.broadcast %cst_26 : f32 to vector<2x1xf32>
      %c0_27 = arith.constant 0 : index
      %c0_28 = arith.constant 0 : index
      %36 = vector.load %arg8[%c0_27, %c0_28] : memref<2x1xf32, #tpu.memory_space<vmem>>, vector<2x1xf32>
      tpu.vector_store %arg8[%c0_27, %c0_28], %35 {strides = array<i32>} : memref<2x1xf32, #tpu.memory_space<vmem>>, vector<2x1xf32>,
      %cst_29 = arith.constant 0.000000e+00 : f32
      %37 = vector.broadcast %cst_29 : f32 to vector<2x1xf32>
      %c0_30 = arith.constant 0 : index
      %c0_31 = arith.constant 0 : index
      %38 = vector.load %arg9[%c0_30, %c0_31] : memref<2x1xf32, #tpu.memory_space<vmem>>, vector<2x1xf32>
      tpu.vector_store %arg9[%c0_30, %c0_31], %37 {strides = array<i32>} : memref<2x1xf32, #tpu.memory_space<vmem>>, vector<2x1xf32>,
      %cst_32 = arith.constant 0.000000e+00 : f32
      %39 = vector.broadcast %cst_32 : f32 to vector<2x32xf32>
      %c0_33 = arith.constant 0 : index
      %c0_34 = arith.constant 0 : index
      %40 = vector.load %arg10[%c0_33, %c0_34] : memref<2x32xf32, #tpu.memory_space<vmem>>, vector<2x32xf32>
      tpu.vector_store %arg10[%c0_33, %c0_34], %39 {strides = array<i32>} : memref<2x32xf32, #tpu.memory_space<vmem>>, vector<2x32xf32>,
    } else {
    }
    %c0 = arith.constant 0 : index
    %c0_1 = arith.constant 0 : index
    %c0_2 = arith.constant 0 : index
    %3 = vector.load %arg4[%c0, %c0_1, %c0_2] : memref<2x1x32xf32, #tpu.memory_space<vmem>>, vector<2x1x32xf32>
    %c0_3 = arith.constant 0 : index
    %c0_4 = arith.constant 0 : index
    %c0_5 = arith.constant 0 : index
    %4 = vector.load %arg3[%c0_3, %c0_4, %c0_5] : memref<2x8x32xf32, #tpu.memory_space<vmem>>, vector<2x8x32xf32>
    %c0_6 = arith.constant 0 : index
    %c0_7 = arith.constant 0 : index
    %c0_8 = arith.constant 0 : index
    %5 = vector.load %arg2[%c0_6, %c0_7, %c0_8] : memref<2x8x32xf32, #tpu.memory_space<vmem>>, vector<2x8x32xf32>
    "tpu.trace_start"() <{level = 10 : i32, message = "bqd,bkd->bqk"}> : () -> ()
    %cst = arith.constant dense<0.000000e+00> : vector<2x1x8xf32>
    %6 = tpu.matmul %3, %4, %cst {dimension_numbers = #tpu.dot_dimension_numbers<[2], [2], [1], [1], [0, 0, 0, 1, 1, 1], [0], [0]>} : vector<2x1x32xf32>, vector<2x8x32xf32>, vector<2x1x8xf32> -> vector<2x1x8xf32>
    "tpu.trace_stop"() : () -> ()
    %7 = vector.shape_cast %6 : vector<2x1x8xf32> to vector<2x8xf32>
    %c0_9 = arith.constant 0 : index
    %c0_10 = arith.constant 0 : index
    %8 = vector.load %arg8[%c0_9, %c0_10] : memref<2x1xf32, #tpu.memory_space<vmem>>, vector<2x1xf32>
    %cst_11 = arith.constant dense<0xFF800000> : vector<2xf32>
    %9 = vector.multi_reduction <maximumf>, %7, %cst_11 [1] : vector<2x8xf32> to vector<2xf32>
    %10 = vector.shape_cast %9 : vector<2xf32> to vector<2x1xf32>
    %11 = arith.maximumf %8, %10 : vector<2x1xf32>
    %12 = arith.subf %8, %11 : vector<2x1xf32>
    %13 = math.exp %12 : vector<2x1xf32>
    %14 = vector.broadcast %11 : vector<2x1xf32> to vector<2x8xf32>
    %15 = arith.subf %7, %14 : vector<2x8xf32>
    %16 = math.exp %15 : vector<2x8xf32>
    %c0_12 = arith.constant 0 : index
    %c0_13 = arith.constant 0 : index
    %17 = vector.load %arg9[%c0_12, %c0_13] : memref<2x1xf32, #tpu.memory_space<vmem>>, vector<2x1xf32>
    %18 = arith.mulf %13, %17 : vector<2x1xf32>
    %cst_14 = arith.constant dense<0.000000e+00> : vector<2xf32>
    %19 = vector.multi_reduction <add>, %16, %cst_14 [1] : vector<2x8xf32> to vector<2xf32>
    %20 = vector.shape_cast %19 : vector<2xf32> to vector<2x1xf32>
    %21 = arith.addf %18, %20 : vector<2x1xf32>
    %c0_15 = arith.constant 0 : index
    %c0_16 = arith.constant 0 : index
    %22 = vector.load %arg9[%c0_15, %c0_16] : memref<2x1xf32, #tpu.memory_space<vmem>>, vector<2x1xf32>
    tpu.vector_store %arg9[%c0_15, %c0_16], %21 {strides = array<i32>} : memref<2x1xf32, #tpu.memory_space<vmem>>, vector<2x1xf32>,
    %23 = vector.shape_cast %16 : vector<2x8xf32> to vector<2x1x8xf32>
    "tpu.trace_start"() <{level = 10 : i32, message = "bqk,bkd->bqd"}> : () -> ()
    %cst_17 = arith.constant dense<0.000000e+00> : vector<2x1x32xf32>
    %24 = tpu.matmul %23, %5, %cst_17 {dimension_numbers = #tpu.dot_dimension_numbers<[2], [1], [1], [2], [0, 0, 0, 1, 1, 2], [0], [0]>} : vector<2x1x8xf32>, vector<2x8x32xf32>, vector<2x1x32xf32> -> vector<2x1x32xf32>
    "tpu.trace_stop"() : () -> ()
    %25 = vector.shape_cast %24 : vector<2x1x32xf32> to vector<2x32xf32>
    %c0_18 = arith.constant 0 : index
    %c0_19 = arith.constant 0 : index
    %26 = vector.load %arg10[%c0_18, %c0_19] : memref<2x32xf32, #tpu.memory_space<vmem>>, vector<2x32xf32>
    %27 = vector.broadcast %13 : vector<2x1xf32> to vector<2x32xf32>
    %28 = arith.mulf %27, %26 : vector<2x32xf32>
    %29 = arith.addf %28, %25 : vector<2x32xf32>
    %c0_20 = arith.constant 0 : index
    %c0_21 = arith.constant 0 : index
    %30 = vector.load %arg10[%c0_20, %c0_21] : memref<2x32xf32, #tpu.memory_space<vmem>>, vector<2x32xf32>
    tpu.vector_store %arg10[%c0_20, %c0_21], %29 {strides = array<i32>} : memref<2x32xf32, #tpu.memory_space<vmem>>, vector<2x32xf32>,
    %c0_22 = arith.constant 0 : index
    %c0_23 = arith.constant 0 : index
    %31 = vector.load %arg8[%c0_22, %c0_23] : memref<2x1xf32, #tpu.memory_space<vmem>>, vector<2x1xf32>
    tpu.vector_store %arg8[%c0_22, %c0_23], %11 {strides = array<i32>} : memref<2x1xf32, #tpu.memory_space<vmem>>, vector<2x1xf32>,
    %c0_i32_24 = arith.constant 0 : i32
    %32 = arith.cmpi eq, %arg1, %c0_i32_24 : i32
    %33 = arith.extui %32 : i1 to i32
    %c0_i32_25 = arith.constant 0 : i32
    %34 = arith.cmpi ne, %33, %c0_i32_25 : i32
    scf.if %34 {
      %c0_26 = arith.constant 0 : index
      %c0_27 = arith.constant 0 : index
      %35 = vector.load %arg9[%c0_26, %c0_27] : memref<2x1xf32, #tpu.memory_space<vmem>>, vector<2x1xf32>
      %36 = tpu.reciprocal %35 : vector<2x1xf32> -> vector<2x1xf32>
      %c0_28 = arith.constant 0 : index
      %c0_29 = arith.constant 0 : index
      %37 = vector.load %arg10[%c0_28, %c0_29] : memref<2x32xf32, #tpu.memory_space<vmem>>, vector<2x32xf32>
      %38 = vector.broadcast %36 : vector<2x1xf32> to vector<2x32xf32>
      %39 = arith.mulf %37, %38 : vector<2x32xf32>
      %40 = vector.shape_cast %3 : vector<2x1x32xf32> to vector<2x32xf32>
      %c0_30 = arith.constant 0 : index
      %c0_31 = arith.constant 0 : index
      %41 = vector.load %arg5[%c0_30, %c0_31] : memref<32x32xf32, #tpu.memory_space<vmem>>, vector<32x32xf32>
      %cst_32 = arith.constant dense<0.000000e+00> : vector<2x32xf32>
      %42 = tpu.matmul %40, %41, %cst_32 {dimension_numbers = #tpu.dot_dimension_numbers<[1], [0], [0], [1], [0, 0, 1, 1], [], []>} : vector<2x32xf32>, vector<32x32xf32>, vector<2x32xf32> -> vector<2x32xf32>
      %c0_33 = arith.constant 0 : index
      %c0_34 = arith.constant 0 : index
      %43 = vector.load %arg6[%c0_33, %c0_34] : memref<32x32xf32, #tpu.memory_space<vmem>>, vector<32x32xf32>
      %cst_35 = arith.constant dense<0.000000e+00> : vector<2x32xf32>
      %44 = tpu.matmul %39, %43, %cst_35 {dimension_numbers = #tpu.dot_dimension_numbers<[1], [0], [0], [1], [0, 0, 1, 1], [], []>} : vector<2x32xf32>, vector<32x32xf32>, vector<2x32xf32> -> vector<2x32xf32>
      %45 = arith.addf %42, %44 : vector<2x32xf32>
      %46 = math.tanh %45 : vector<2x32xf32>
      %c0_36 = arith.constant 0 : index
      %c0_37 = arith.constant 0 : index
      %47 = vector.load %arg7[%c0_36, %c0_37] : memref<2x32xf32, #tpu.memory_space<vmem>>, vector<2x32xf32>
      tpu.vector_store %arg7[%c0_36, %c0_37], %46 {strides = array<i32>} : memref<2x32xf32, #tpu.memory_space<vmem>>, vector<2x32xf32>,
    } else {
    }
    return
  }
  func.func @transform_0(%arg0: i32, %arg1: i32) -> (i32, i32, i32) {
    %c0_i32 = arith.constant 0 : i32
    %c0_i32_0 = arith.constant 0 : i32
    return %arg0, %arg1, %c0_i32 : i32, i32, i32
  }
  func.func @transform_1(%arg0: i32, %arg1: i32) -> (i32, i32, i32) {
    %c0_i32 = arith.constant 0 : i32
    %c0_i32_0 = arith.constant 0 : i32
    return %arg0, %arg1, %c0_i32 : i32, i32, i32
  }
  func.func @transform_2(%arg0: i32, %arg1: i32) -> (i32, i32, i32) {
    %c0_i32 = arith.constant 0 : i32
    %c0_i32_0 = arith.constant 0 : i32
    %c0_i32_1 = arith.constant 0 : i32
    return %arg0, %c0_i32, %c0_i32_0 : i32, i32, i32
  }
  func.func @transform_3(%arg0: i32, %arg1: i32) -> (i32, i32) {
    %c0_i32 = arith.constant 0 : i32
    %c0_i32_0 = arith.constant 0 : i32
    %c0_i32_1 = arith.constant 0 : i32
    return %c0_i32, %c0_i32_0 : i32, i32
  }
  func.func @transform_4(%arg0: i32, %arg1: i32) -> (i32, i32) {
    %c0_i32 = arith.constant 0 : i32
    %c0_i32_0 = arith.constant 0 : i32
    %c0_i32_1 = arith.constant 0 : i32
    return %c0_i32, %c0_i32_0 : i32, i32
  }
  func.func @transform_5(%arg0: i32, %arg1: i32) -> (i32, i32) {
    %c0_i32 = arith.constant 0 : i32
    %c0_i32_0 = arith.constant 0 : i32
    return %arg0, %c0_i32 : i32, i32
  }
}

</mosaic_0001>

<llo_original>
// kernel: luong_attention.1
$region0: #{luong_attention.1}
  #allocation0 [shape = 'u32[]', space=smem, size = 0x4, offset = 0x4, fixed_abs, tag = 'smem constant byte address 0x4 - core index']
  #allocation1 [shape = 'u32[144,128]{1,0:T(1,128)}', space=vmem, size = 0x12000, scoped, tag = 'internal scratch']
  #allocation2 [shape = 'f32[2,1]{1,0:T(2,128)}', space=vmem, size = 0x400, scoped, tag = 'scratch operand']
  #allocation3 [shape = 'f32[2,1]{1,0:T(2,128)}', space=vmem, size = 0x400, scoped, tag = 'scratch operand']
  #allocation4 [shape = 'f32[2,32]{1,0:T(2,128)}', space=vmem, size = 0x400, scoped, tag = 'scratch operand']
  %s0 = inlined_call_operand.hbm [shape: f32[2,8,32], index: 0, kind: input, shape index: {}]
  %s1 = inlined_call_operand.hbm [shape: f32[2,8,32], index: 1, kind: input, shape index: {}]
  %s2 = inlined_call_operand.vmem [shape: f32[2,1,32], index: 2, kind: input, shape index: {}]
  %s3 = inlined_call_operand.hbm [shape: f32[32,32], index: 3, kind: input, shape index: {}]
  %s4 = inlined_call_operand.hbm [shape: f32[32,32], index: 4, kind: input, shape index: {}]
  %s5 = inlined_call_operand.hbm [shape: f32[2,32], index: 5, kind: output, shape index: {}]
  %s6 = sld [smem:[#allocation0]]
  $region54: #{luong_attention.1} parent=0
    _
  %s8 = ssub.s32 1, %s6
  %s9 = scalar_select 0, %s8, %s6
  $region1: #{luong_attention.1} parent=0
    #allocation5 [shape = 'u8[8192]{0}', space=vmem, size = 0x2000, scoped, tag = 'input window, operand 0, single buffered']
    #allocation6 [shape = 's32[1]{0}', space=sflag, size = 0x4, scoped, tag = 'scoped memory for luong_attention.1']
    #allocation7 [shape = 's32[1]{0}', space=sflag, size = 0x4, scoped, tag = 'scoped memory for luong_attention.1']
    #allocation8 [shape = 'u8[8192]{0}', space=vmem, size = 0x2000, scoped, tag = 'input window, operand 1, single buffered']
    #allocation9 [shape = 's32[1]{0}', space=sflag, size = 0x4, scoped, tag = 'scoped memory for luong_attention.1']
    #allocation10 [shape = 'u8[16384]{0}', space=vmem, size = 0x4000, scoped, tag = 'input window, operand 3, single buffered']
    #allocation11 [shape = 'u8[16384]{0}', space=vmem, size = 0x4000, scoped, tag = 'input window, operand 4, single buffered']
    #allocation12 [shape = 's32[1]{0}', space=sflag, size = 0x4, scoped, tag = 'scoped memory for luong_attention.1']
    #allocation13 [shape = 'u8[1024]{0}', space=vmem, size = 0x400, scoped, tag = 'output window, operand 0, single buffered']
    %10 = vsyncpa [#allocation6], 0
    %11 = vsyncpa [#allocation9], 0
    %12 = vsyncpa [#allocation12], 0
    %13 = vsyncpa [#allocation7], 0
    // Predicated region
    $region2: #{luong_attention.1} parent=1 // pred_check
      _
    $region3: #{luong_attention.1} parent=1 // pred_check_branch
      %15 = sbr.rel (0) target = $region5
    $region4: #{luong_attention.1} parent=1 // pred_region
      %s17 = ssub.s32 256, 256
      %18 = vsyncadd [#allocation6], %s17
      %s19 = sshll.u32 [#allocation5], 4
      %s20 = int_to_ptr.vmem [resolvable:$true] %s19
      %25 = dma.hbm_to_vmem [thread:$0]  %s0, 256, %s20, [#allocation6], 128, 128, 8
    $region5: #{luong_attention.1} parent=1 // pred_fallthru
      _
    // Predicated region
    $region6: #{luong_attention.1} parent=1 // pred_check
      _
    $region7: #{luong_attention.1} parent=1 // pred_check_branch
      %27 = sbr.rel (0) target = $region9
    $region8: #{luong_attention.1} parent=1 // pred_region
      %s29 = ssub.s32 256, 256
      %30 = vsyncadd [#allocation9], %s29
      %s31 = sshll.u32 [#allocation8], 4
      %s32 = int_to_ptr.vmem [resolvable:$true] %s31
      %37 = dma.hbm_to_vmem [thread:$0]  %s1, 256, %s32, [#allocation9], 128, 128, 8
    $region9: #{luong_attention.1} parent=1 // pred_fallthru
      _
    // Predicated region
    $region10: #{luong_attention.1} parent=1 // pred_check
      _
    $region11: #{luong_attention.1} parent=1 // pred_check_branch
      %39 = sbr.rel (0) target = $region13
    $region12: #{luong_attention.1} parent=1 // pred_region
      _
    $region13: #{luong_attention.1} parent=1 // pred_fallthru
      _
    // Predicated region
    $region14: #{luong_attention.1} parent=1 // pred_check
      _
    $region15: #{luong_attention.1} parent=1 // pred_check_branch
      %41 = sbr.rel (0) target = $region17
    $region16: #{luong_attention.1} parent=1 // pred_region
      %s43 = ssub.s32 512, 512
      %44 = vsyncadd [#allocation9], %s43
      %s45 = sshll.u32 [#allocation10], 4
      %s46 = int_to_ptr.vmem [resolvable:$true] %s45
      %51 = dma.hbm_to_vmem [thread:$0]  %s3, 512, %s46, [#allocation9], 128, 128, 8
    $region17: #{luong_attention.1} parent=1 // pred_fallthru
      _
    // Predicated region
    $region18: #{luong_attention.1} parent=1 // pred_check
      _
    $region19: #{luong_attention.1} parent=1 // pred_check_branch
      %53 = sbr.rel (0) target = $region21
    $region20: #{luong_attention.1} parent=1 // pred_region
      %s55 = ssub.s32 512, 512
      %56 = vsyncadd [#allocation12], %s55
      %s57 = sshll.u32 [#allocation11], 4
      %s58 = int_to_ptr.vmem [resolvable:$true] %s57
      %63 = dma.hbm_to_vmem [thread:$0]  %s4, 512, %s58, [#allocation12], 128, 128, 8
    $region21: #{luong_attention.1} parent=1 // pred_fallthru
      _
    // Predicated region
    $region22: #{luong_attention.1} parent=1 // pred_check
      _
    $region23: #{luong_attention.1} parent=1 // pred_check_branch
      %65 = sbr.rel (0) target = $region25
    $region24: #{luong_attention.1} parent=1 // pred_region
      %66 = dma.done [#allocation6], 256
    $region25: #{luong_attention.1} parent=1 // pred_fallthru
      _
    // Predicated region
    $region26: #{luong_attention.1} parent=1 // pred_check
      _
    $region27: #{luong_attention.1} parent=1 // pred_check_branch
      %68 = sbr.rel (0) target = $region29
    $region28: #{luong_attention.1} parent=1 // pred_region
      %69 = dma.done [#allocation9], 256
    $region29: #{luong_attention.1} parent=1 // pred_fallthru
      _
    // Predicated region
    $region30: #{luong_attention.1} parent=1 // pred_check
      _
    $region31: #{luong_attention.1} parent=1 // pred_check_branch
      %71 = sbr.rel (0) target = $region33
    $region32: #{luong_attention.1} parent=1 // pred_region
      %72 = dma.done [#allocation9], 512
    $region33: #{luong_attention.1} parent=1 // pred_fallthru
      _
    // Predicated region
    $region34: #{luong_attention.1} parent=1 // pred_check
      _
    $region35: #{luong_attention.1} parent=1 // pred_check_branch
      %74 = sbr.rel (0) target = $region37
    $region36: #{luong_attention.1} parent=1 // pred_region
      %75 = dma.done [#allocation12], 512
    $region37: #{luong_attention.1} parent=1 // pred_fallthru
      _
    %p76 = scmp.eq.s32.totalorder 0, 0
    // Predicated region
    $region38: #{luong_attention.1} parent=1 // pred_check
      %p77 = pneg %p76
    $region39: #{luong_attention.1} parent=1 // pred_check_branch
      %79 = sbr.rel (%p77) target = $region41
    $region40: #{luong_attention.1} parent=1 // pred_region
      %vm80 = vcmask 1024
      %81 = vst.msk [vmem:[#allocation2] sm:$0x3] %vm80, -inf
      %82 = vst.msk [vmem:[#allocation3] sm:$0x3] %vm80, 0.0
      %vm83 = vcmask 254976
      %84 = vst.msk [vmem:[#allocation4] sm:$0x3] %vm83, 0.0
    $region41: #{luong_attention.1} parent=1 // pred_fallthru
      _
    %v85 = vld [vmem:[%s2] sm:$0x1]
    %v86 = vld [vmem:[%s2 + $0x1] sm:$0x1]
    %v87 = vld [vmem:[#allocation8] sm:$0xff]
    %v88 = vld [vmem:[#allocation8 + $0x8] sm:$0xff]
    %v89 = vld [vmem:[#allocation5] sm:$0xff]
    %v90 = vld [vmem:[#allocation5 + $0x8] sm:$0xff]
    %vm91 = vcmask 261120
    %v93 = vsel %vm91, %v85, 0
    %v96 = vsel %vm91, %v87, 0
    %98 = vmatprep.subr.mxu0 0.0
    %99 = vmatpush1.xpose.msra.mxu0 0.0
    %100 = vmatprep.subr.mxu0 0.0
    %101 = vmatpush1.xpose.msra.mxu0 0.0
    %102 = vmatprep.subr.mxu0 0.0
    %103 = vmatpush1.xpose.msra.mxu0 0.0
    %104 = vmatprep.subr.mxu0 0.0
    %105 = vmatpush1.xpose.msra.mxu0 0.0
    %106 = vmatprep.subr.mxu0 0.0
    %107 = vmatpush1.xpose.msra.mxu0 0.0
    %108 = vmatprep.subr.mxu0 0.0
    %109 = vmatpush1.xpose.msra.mxu0 0.0
    %110 = vmatprep.subr.mxu0 0.0
    %111 = vmatpush1.xpose.msra.mxu0 0.0
    %112 = vmatprep.subr.mxu0 0.0
    %113 = vmatpush1.xpose.msra.mxu0 0.0
    %114 = vmatprep.subr.mxu0 0.0
    %115 = vmatpush1.xpose.msra.mxu0 0.0
    %116 = vmatprep.subr.mxu0 0.0
    %117 = vmatpush1.xpose.msra.mxu0 0.0
    %118 = vmatprep.subr.mxu0 0.0
    %119 = vmatpush1.xpose.msra.mxu0 0.0
    %120 = vmatprep.subr.mxu0 0.0
    %121 = vmatpush1.xpose.msra.mxu0 0.0
    %122 = vmatprep.subr.mxu0 0.0
    %123 = vmatpush1.xpose.msra.mxu0 0.0
    %124 = vmatprep.subr.mxu0 0.0
    %125 = vmatpush1.xpose.msra.mxu0 0.0
    %126 = vmatprep.subr.mxu0 0.0
    %127 = vmatpush1.xpose.msra.mxu0 0.0
    %128 = vmatprep.subr.mxu0 0.0
    %129 = vmatpush1.xpose.msra.mxu0 %v96
    %130 = vmatprep.subr.mxu0 0.0
    %131 = vmatpush2.xpose.msra.mxu0 0.0
    %132 = vmatprep.subr.mxu0 0.0
    %133 = vmatpush2.xpose.msra.mxu0 0.0
    %134 = vmatprep.subr.mxu0 0.0
    %135 = vmatpush2.xpose.msra.mxu0 0.0
    %136 = vmatprep.subr.mxu0 0.0
    %137 = vmatpush2.xpose.msra.mxu0 0.0
    %138 = vmatprep.subr.mxu0 0.0
    %139 = vmatpush2.xpose.msra.mxu0 0.0
    %140 = vmatprep.subr.mxu0 0.0
    %141 = vmatpush2.xpose.msra.mxu0 0.0
    %142 = vmatprep.subr.mxu0 0.0
    %143 = vmatpush2.xpose.msra.mxu0 0.0
    %144 = vmatprep.subr.mxu0 0.0
    %145 = vmatpush2.xpose.msra.mxu0 0.0
    %146 = vmatprep.subr.mxu0 0.0
    %147 = vmatpush2.xpose.msra.mxu0 0.0
    %148 = vmatprep.subr.mxu0 0.0
    %149 = vmatpush2.xpose.msra.mxu0 0.0
    %150 = vmatprep.subr.mxu0 0.0
    %151 = vmatpush2.xpose.msra.mxu0 0.0
    %152 = vmatprep.subr.mxu0 0.0
    %153 = vmatpush2.xpose.msra.mxu0 0.0
    %154 = vmatprep.subr.mxu0 0.0
    %155 = vmatpush2.xpose.msra.mxu0 0.0
    %156 = vmatprep.subr.mxu0 0.0
    %157 = vmatpush2.xpose.msra.mxu0 0.0
    %158 = vmatprep.subr.mxu0 0.0
    %159 = vmatpush2.xpose.msra.mxu0 0.0
    %160 = vmatprep.subr.mxu0 0.0
    %161 = vmatpush2.xpose.msra.mxu0 0.0
    %162 = vmatprep.mubr.f32.mxu0 0.0
    %163 = vmatmul.mubr.f32.gmra.mxu0 %v93
    %v164 = vpop.f32.mrf.mxu0
    %v165 = vadd.f32 0.0, %v164
    %v166 = vpop.f32.mrf.mxu0
    %167 = vdwg.mxu0
    %v169 = vsel %vm91, %v86, 0
    %v172 = vsel %vm91, %v88, 0
    %174 = vmatprep.subr.mxu0 0.0
    %175 = vmatpush1.xpose.msra.mxu0 0.0
    %176 = vmatprep.subr.mxu0 0.0
    %177 = vmatpush1.xpose.msra.mxu0 0.0
    %178 = vmatprep.subr.mxu0 0.0
    %179 = vmatpush1.xpose.msra.mxu0 0.0
    %180 = vmatprep.subr.mxu0 0.0
    %181 = vmatpush1.xpose.msra.mxu0 0.0
    %182 = vmatprep.subr.mxu0 0.0
    %183 = vmatpush1.xpose.msra.mxu0 0.0
    %184 = vmatprep.subr.mxu0 0.0
    %185 = vmatpush1.xpose.msra.mxu0 0.0
    %186 = vmatprep.subr.mxu0 0.0
    %187 = vmatpush1.xpose.msra.mxu0 0.0
    %188 = vmatprep.subr.mxu0 0.0
    %189 = vmatpush1.xpose.msra.mxu0 0.0
    %190 = vmatprep.subr.mxu0 0.0
    %191 = vmatpush1.xpose.msra.mxu0 0.0
    %192 = vmatprep.subr.mxu0 0.0
    %193 = vmatpush1.xpose.msra.mxu0 0.0
    %194 = vmatprep.subr.mxu0 0.0
    %195 = vmatpush1.xpose.msra.mxu0 0.0
    %196 = vmatprep.subr.mxu0 0.0
    %197 = vmatpush1.xpose.msra.mxu0 0.0
    %198 = vmatprep.subr.mxu0 0.0
    %199 = vmatpush1.xpose.msra.mxu0 0.0
    %200 = vmatprep.subr.mxu0 0.0
    %201 = vmatpush1.xpose.msra.mxu0 0.0
    %202 = vmatprep.subr.mxu0 0.0
    %203 = vmatpush1.xpose.msra.mxu0 0.0
    %204 = vmatprep.subr.mxu0 0.0
    %205 = vmatpush1.xpose.msra.mxu0 %v172
    %206 = vmatprep.subr.mxu0 0.0
    %207 = vmatpush2.xpose.msra.mxu0 0.0
    %208 = vmatprep.subr.mxu0 0.0
    %209 = vmatpush2.xpose.msra.mxu0 0.0
    %210 = vmatprep.subr.mxu0 0.0
    %211 = vmatpush2.xpose.msra.mxu0 0.0
    %212 = vmatprep.subr.mxu0 0.0
    %213 = vmatpush2.xpose.msra.mxu0 0.0
    %214 = vmatprep.subr.mxu0 0.0
    %215 = vmatpush2.xpose.msra.mxu0 0.0
    %216 = vmatprep.subr.mxu0 0.0
    %217 = vmatpush2.xpose.msra.mxu0 0.0
    %218 = vmatprep.subr.mxu0 0.0
    %219 = vmatpush2.xpose.msra.mxu0 0.0
    %220 = vmatprep.subr.mxu0 0.0
    %221 = vmatpush2.xpose.msra.mxu0 0.0
    %222 = vmatprep.subr.mxu0 0.0
    %223 = vmatpush2.xpose.msra.mxu0 0.0
    %224 = vmatprep.subr.mxu0 0.0
    %225 = vmatpush2.xpose.msra.mxu0 0.0
    %226 = vmatprep.subr.mxu0 0.0
    %227 = vmatpush2.xpose.msra.mxu0 0.0
    %228 = vmatprep.subr.mxu0 0.0
    %229 = vmatpush2.xpose.msra.mxu0 0.0
    %230 = vmatprep.subr.mxu0 0.0
    %231 = vmatpush2.xpose.msra.mxu0 0.0
    %232 = vmatprep.subr.mxu0 0.0
    %233 = vmatpush2.xpose.msra.mxu0 0.0
    %234 = vmatprep.subr.mxu0 0.0
    %235 = vmatpush2.xpose.msra.mxu0 0.0
    %236 = vmatprep.subr.mxu0 0.0
    %237 = vmatpush2.xpose.msra.mxu0 0.0
    %238 = vmatprep.mubr.f32.mxu0 0.0
    %239 = vmatmul.mubr.f32.gmra.mxu0 %v169
    %v240 = vpop.f32.mrf.mxu0
    %v241 = vadd.f32 0.0, %v240
    %v242 = vpop.f32.mrf.mxu0
    %243 = vdwg.mxu0
    %v244 = vld [vmem:[#allocation2] sm:$0x3]
    %v247 = vrot.slane %v241, 7
    %vm248 = vcmask 1041409
    %v249 = vsel %vm248, %v247, %v165
    %vm251 = vcmask 58368
    %v252 = vsel %vm251, %v249, -inf
    %253 = vmax.xlane.f32.xlu0 %v252
    %v254 = vpop.xlane.xlu0 %253
    %v255 = vmax.f32 %v244, %v254
    %v256 = vsub.f32 %v244, %v255
    %v257 = vmul.f32 %v256, 1.442695
    %v258 = vpow.pop %v257
    %260 = vset.pattern.permute.xlu0 0
    %261 = vperm.xlu0 %260, %v255
    %v262 = vpop.permute.xlu0 %261
    %v263 = vrot.slane %v262, 1
    %v266 = vsub.f32 %v165, %v262
    %v267 = vsub.f32 %v241, %v263
    %v268 = vmul.f32 %v266, 1.442695
    %v269 = vpow.pop %v268
    %v270 = vmul.f32 %v267, 1.442695
    %v271 = vpow.pop %v270
    %v272 = vld [vmem:[#allocation3] sm:$0x3]
    %v273 = vmul.f32 %v258, %v272
    %v276 = vrot.slane %v271, 7
    %v277 = vsel %vm248, %v276, %v269
    %v279 = vsel %vm251, %v277, 0.0
    %280 = vadd.xlane.f32.xlu0 %v279
    %v281 = vpop.xlane.xlu0 %280
    %v282 = vadd.f32 %v273, %v281
    %vm283 = vcmask 1024
    %284 = vst.msk [vmem:[#allocation3] sm:$0x3] %vm283, %v282
    %vm285 = vcmask 64512
    %v286 = vsel %vm285, %v269, 0
    %288 = vmatprep.subr.mxu0 0.0
    %289 = vmatpush1.msra.mxu0 0.0
    %290 = vmatprep.subr.mxu0 0.0
    %291 = vmatpush1.msra.mxu0 0.0
    %292 = vmatprep.subr.mxu0 0.0
    %293 = vmatpush1.msra.mxu0 0.0
    %294 = vmatprep.subr.mxu0 0.0
    %295 = vmatpush1.msra.mxu0 0.0
    %296 = vmatprep.subr.mxu0 0.0
    %297 = vmatpush1.msra.mxu0 0.0
    %298 = vmatprep.subr.mxu0 0.0
    %299 = vmatpush1.msra.mxu0 0.0
    %300 = vmatprep.subr.mxu0 0.0
    %301 = vmatpush1.msra.mxu0 0.0
    %302 = vmatprep.subr.mxu0 0.0
    %303 = vmatpush1.msra.mxu0 0.0
    %304 = vmatprep.subr.mxu0 0.0
    %305 = vmatpush1.msra.mxu0 0.0
    %306 = vmatprep.subr.mxu0 0.0
    %307 = vmatpush1.msra.mxu0 0.0
    %308 = vmatprep.subr.mxu0 0.0
    %309 = vmatpush1.msra.mxu0 0.0
    %310 = vmatprep.subr.mxu0 0.0
    %311 = vmatpush1.msra.mxu0 0.0
    %312 = vmatprep.subr.mxu0 0.0
    %313 = vmatpush1.msra.mxu0 0.0
    %314 = vmatprep.subr.mxu0 0.0
    %315 = vmatpush1.msra.mxu0 0.0
    %316 = vmatprep.subr.mxu0 0.0
    %317 = vmatpush1.msra.mxu0 0.0
    %318 = vmatprep.subr.mxu0 0.0
    %319 = vmatpush1.msra.mxu0 %v89
    %320 = vmatprep.subr.mxu0 0.0
    %321 = vmatpush2.msra.mxu0 0.0
    %322 = vmatprep.subr.mxu0 0.0
    %323 = vmatpush2.msra.mxu0 0.0
    %324 = vmatprep.subr.mxu0 0.0
    %325 = vmatpush2.msra.mxu0 0.0
    %326 = vmatprep.subr.mxu0 0.0
    %327 = vmatpush2.msra.mxu0 0.0
    %328 = vmatprep.subr.mxu0 0.0
    %329 = vmatpush2.msra.mxu0 0.0
    %330 = vmatprep.subr.mxu0 0.0
    %331 = vmatpush2.msra.mxu0 0.0
    %332 = vmatprep.subr.mxu0 0.0
    %333 = vmatpush2.msra.mxu0 0.0
    %334 = vmatprep.subr.mxu0 0.0
    %335 = vmatpush2.msra.mxu0 0.0
    %336 = vmatprep.subr.mxu0 0.0
    %337 = vmatpush2.msra.mxu0 0.0
    %338 = vmatprep.subr.mxu0 0.0
    %339 = vmatpush2.msra.mxu0 0.0
    %340 = vmatprep.subr.mxu0 0.0
    %341 = vmatpush2.msra.mxu0 0.0
    %342 = vmatprep.subr.mxu0 0.0
    %343 = vmatpush2.msra.mxu0 0.0
    %344 = vmatprep.subr.mxu0 0.0
    %345 = vmatpush2.msra.mxu0 0.0
    %346 = vmatprep.subr.mxu0 0.0
    %347 = vmatpush2.msra.mxu0 0.0
    %348 = vmatprep.subr.mxu0 0.0
    %349 = vmatpush2.msra.mxu0 0.0
    %350 = vmatprep.subr.mxu0 0.0
    %351 = vmatpush2.msra.mxu0 0.0
    %352 = vmatprep.mubr.f32.mxu0 0.0
    %353 = vmatmul.mubr.f32.gmra.mxu0 %v286
    %v354 = vpop.f32.mrf.mxu0
    %v355 = vadd.f32 0.0, %v354
    %v356 = vpop.f32.mrf.mxu0
    %357 = vdwg.mxu0
    %v358 = vsel %vm285, %v271, 0
    %360 = vmatprep.subr.mxu0 0.0
    %361 = vmatpush1.msra.mxu0 0.0
    %362 = vmatprep.subr.mxu0 0.0
    %363 = vmatpush1.msra.mxu0 0.0
    %364 = vmatprep.subr.mxu0 0.0
    %365 = vmatpush1.msra.mxu0 0.0
    %366 = vmatprep.subr.mxu0 0.0
    %367 = vmatpush1.msra.mxu0 0.0
    %368 = vmatprep.subr.mxu0 0.0
    %369 = vmatpush1.msra.mxu0 0.0
    %370 = vmatprep.subr.mxu0 0.0
    %371 = vmatpush1.msra.mxu0 0.0
    %372 = vmatprep.subr.mxu0 0.0
    %373 = vmatpush1.msra.mxu0 0.0
    %374 = vmatprep.subr.mxu0 0.0
    %375 = vmatpush1.msra.mxu0 0.0
    %376 = vmatprep.subr.mxu0 0.0
    %377 = vmatpush1.msra.mxu0 0.0
    %378 = vmatprep.subr.mxu0 0.0
    %379 = vmatpush1.msra.mxu0 0.0
    %380 = vmatprep.subr.mxu0 0.0
    %381 = vmatpush1.msra.mxu0 0.0
    %382 = vmatprep.subr.mxu0 0.0
    %383 = vmatpush1.msra.mxu0 0.0
    %384 = vmatprep.subr.mxu0 0.0
    %385 = vmatpush1.msra.mxu0 0.0
    %386 = vmatprep.subr.mxu0 0.0
    %387 = vmatpush1.msra.mxu0 0.0
    %388 = vmatprep.subr.mxu0 0.0
    %389 = vmatpush1.msra.mxu0 0.0
    %390 = vmatprep.subr.mxu0 0.0
    %391 = vmatpush1.msra.mxu0 %v90
    %392 = vmatprep.subr.mxu0 0.0
    %393 = vmatpush2.msra.mxu0 0.0
    %394 = vmatprep.subr.mxu0 0.0
    %395 = vmatpush2.msra.mxu0 0.0
    %396 = vmatprep.subr.mxu0 0.0
    %397 = vmatpush2.msra.mxu0 0.0
    %398 = vmatprep.subr.mxu0 0.0
    %399 = vmatpush2.msra.mxu0 0.0
    %400 = vmatprep.subr.mxu0 0.0
    %401 = vmatpush2.msra.mxu0 0.0
    %402 = vmatprep.subr.mxu0 0.0
    %403 = vmatpush2.msra.mxu0 0.0
    %404 = vmatprep.subr.mxu0 0.0
    %405 = vmatpush2.msra.mxu0 0.0
    %406 = vmatprep.subr.mxu0 0.0
    %407 = vmatpush2.msra.mxu0 0.0
    %408 = vmatprep.subr.mxu0 0.0
    %409 = vmatpush2.msra.mxu0 0.0
    %410 = vmatprep.subr.mxu0 0.0
    %411 = vmatpush2.msra.mxu0 0.0
    %412 = vmatprep.subr.mxu0 0.0
    %413 = vmatpush2.msra.mxu0 0.0
    %414 = vmatprep.subr.mxu0 0.0
    %415 = vmatpush2.msra.mxu0 0.0
    %416 = vmatprep.subr.mxu0 0.0
    %417 = vmatpush2.msra.mxu0 0.0
    %418 = vmatprep.subr.mxu0 0.0
    %419 = vmatpush2.msra.mxu0 0.0
    %420 = vmatprep.subr.mxu0 0.0
    %421 = vmatpush2.msra.mxu0 0.0
    %422 = vmatprep.subr.mxu0 0.0
    %423 = vmatpush2.msra.mxu0 0.0
    %424 = vmatprep.mubr.f32.mxu0 0.0
    %425 = vmatmul.mubr.f32.gmra.mxu0 %v358
    %v426 = vpop.f32.mrf.mxu0
    %v427 = vadd.f32 0.0, %v426
    %v428 = vpop.f32.mrf.mxu0
    %429 = vdwg.mxu0
    %v430 = vld [vmem:[#allocation4] sm:$0x3]
    %432 = vset.pattern.permute.xlu0 0
    %433 = vperm.xlu0 %432, %v258
    %v434 = vpop.permute.xlu0 %433
    %v436 = vmul.f32 %v434, %v430
    %v439 = vrot.slane %v427, 7
    %v440 = vsel %vm248, %v439, %v355
    %v442 = vadd.f32 %v436, %v440
    %vm443 = vcmask 254976
    %444 = vst.msk [vmem:[#allocation4] sm:$0x3] %vm443, %v442
    %445 = vst.msk [vmem:[#allocation2] sm:$0x3] %vm283, %v255
    // Predicated region
    $region42: #{luong_attention.1} parent=1 // pred_check
      %p446 = pneg %p76
    $region43: #{luong_attention.1} parent=1 // pred_check_branch
      %448 = sbr.rel (%p446) target = $region45
    $region44: #{luong_attention.1} parent=1 // pred_region
      %v449 = vld [vmem:[#allocation3] sm:$0x3]
      %v450 = vrcp.pop %v449
      %v451 = vld [vmem:[#allocation4] sm:$0x3]
      %453 = vset.pattern.permute.xlu0 0
      %454 = vperm.xlu0 %453, %v450
      %v455 = vpop.permute.xlu0 %454
      %v457 = vmul.f32 %v451, %v455
      %v458 = vld [vmem:[#allocation10] sm:$0xff]
      %v459 = vld [vmem:[#allocation10 + $0x8] sm:$0xff]
      %v460 = vld [vmem:[#allocation10 + $0x10] sm:$0xff]
      %v461 = vld [vmem:[#allocation10 + $0x18] sm:$0xff]
      %v462 = vld [vmem:[#allocation11] sm:$0xff]
      %v463 = vld [vmem:[#allocation11 + $0x8] sm:$0xff]
      %v464 = vld [vmem:[#allocation11 + $0x10] sm:$0xff]
      %v465 = vld [vmem:[#allocation11 + $0x18] sm:$0xff]
      %v467 = vsel %vm91, %v457, 0
      %469 = vmatprep.subr.mxu0 0.0
      %470 = vmatpush1.msra.mxu0 0.0
      %471 = vmatprep.subr.mxu0 0.0
      %472 = vmatpush1.msra.mxu0 0.0
      %473 = vmatprep.subr.mxu0 0.0
      %474 = vmatpush1.msra.mxu0 0.0
      %475 = vmatprep.subr.mxu0 0.0
      %476 = vmatpush1.msra.mxu0 0.0
      %477 = vmatprep.subr.mxu0 0.0
      %478 = vmatpush1.msra.mxu0 0.0
      %479 = vmatprep.subr.mxu0 0.0
      %480 = vmatpush1.msra.mxu0 0.0
      %481 = vmatprep.subr.mxu0 0.0
      %482 = vmatpush1.msra.mxu0 0.0
      %483 = vmatprep.subr.mxu0 0.0
      %484 = vmatpush1.msra.mxu0 0.0
      %485 = vmatprep.subr.mxu0 0.0
      %486 = vmatpush1.msra.mxu0 0.0
      %487 = vmatprep.subr.mxu0 0.0
      %488 = vmatpush1.msra.mxu0 0.0
      %489 = vmatprep.subr.mxu0 0.0
      %490 = vmatpush1.msra.mxu0 0.0
      %491 = vmatprep.subr.mxu0 0.0
      %492 = vmatpush1.msra.mxu0 0.0
      %493 = vmatprep.subr.mxu0 0.0
      %494 = vmatpush1.msra.mxu0 %v465
      %495 = vmatprep.subr.mxu0 0.0
      %496 = vmatpush1.msra.mxu0 %v464
      %497 = vmatprep.subr.mxu0 0.0
      %498 = vmatpush1.msra.mxu0 %v463
      %499 = vmatprep.subr.mxu0 0.0
      %500 = vmatpush1.msra.mxu0 %v462
      %501 = vmatprep.subr.mxu0 0.0
      %502 = vmatpush2.msra.mxu0 0.0
      %503 = vmatprep.subr.mxu0 0.0
      %504 = vmatpush2.msra.mxu0 0.0
      %505 = vmatprep.subr.mxu0 0.0
      %506 = vmatpush2.msra.mxu0 0.0
      %507 = vmatprep.subr.mxu0 0.0
      %508 = vmatpush2.msra.mxu0 0.0
      %509 = vmatprep.subr.mxu0 0.0
      %510 = vmatpush2.msra.mxu0 0.0
      %511 = vmatprep.subr.mxu0 0.0
      %512 = vmatpush2.msra.mxu0 0.0
      %513 = vmatprep.subr.mxu0 0.0
      %514 = vmatpush2.msra.mxu0 0.0
      %515 = vmatprep.subr.mxu0 0.0
      %516 = vmatpush2.msra.mxu0 0.0
      %517 = vmatprep.subr.mxu0 0.0
      %518 = vmatpush2.msra.mxu0 0.0
      %519 = vmatprep.subr.mxu0 0.0
      %520 = vmatpush2.msra.mxu0 0.0
      %521 = vmatprep.subr.mxu0 0.0
      %522 = vmatpush2.msra.mxu0 0.0
      %523 = vmatprep.subr.mxu0 0.0
      %524 = vmatpush2.msra.mxu0 0.0
      %525 = vmatprep.subr.mxu0 0.0
      %526 = vmatpush2.msra.mxu0 0.0
      %527 = vmatprep.subr.mxu0 0.0
      %528 = vmatpush2.msra.mxu0 0.0
      %529 = vmatprep.subr.mxu0 0.0
      %530 = vmatpush2.msra.mxu0 0.0
      %531 = vmatprep.subr.mxu0 0.0
      %532 = vmatpush2.msra.mxu0 0.0
      %533 = vmatprep.mubr.f32.mxu0 0.0
      %534 = vmatmul.mubr.f32.gmra.mxu0 %v467
      %v535 = vpop.f32.mrf.mxu0
      %v536 = vadd.f32 0.0, %v535
      %v537 = vpop.f32.mrf.mxu0
      %538 = vdwg.mxu0
      %v539 = vcombine.low %v85, %v86
      %v541 = vunpack.c.l.s4 1966171168
      %v542 = vunpack.c.0.s8 %v541
      %v543 = vlaneseq
      %v544 = vshrl.u32 %v543, 7
      %v545 = vsub.s32 %v542, %v544
      %v546 = vrot.slane %v539, %v545
      %v548 = vunpack.c.l.s4 1966171168
      %v549 = vunpack.c.0.s8 %v548
      %v550 = vlaneseq
      %v551 = vshrl.u32 %v550, 7
      %v552 = vsub.s32 %v549, %v551
      %v553 = vrot.slane %v546, %v552
      %v554 = vsel %vm91, %v553, 0
      %556 = vmatprep.subr.mxu0 0.0
      %557 = vmatpush1.msra.mxu0 0.0
      %558 = vmatprep.subr.mxu0 0.0
      %559 = vmatpush1.msra.mxu0 0.0
      %560 = vmatprep.subr.mxu0 0.0
      %561 = vmatpush1.msra.mxu0 0.0
      %562 = vmatprep.subr.mxu0 0.0
      %563 = vmatpush1.msra.mxu0 0.0
      %564 = vmatprep.subr.mxu0 0.0
      %565 = vmatpush1.msra.mxu0 0.0
      %566 = vmatprep.subr.mxu0 0.0
      %567 = vmatpush1.msra.mxu0 0.0
      %568 = vmatprep.subr.mxu0 0.0
      %569 = vmatpush1.msra.mxu0 0.0
      %570 = vmatprep.subr.mxu0 0.0
      %571 = vmatpush1.msra.mxu0 0.0
      %572 = vmatprep.subr.mxu0 0.0
      %573 = vmatpush1.msra.mxu0 0.0
      %574 = vmatprep.subr.mxu0 0.0
      %575 = vmatpush1.msra.mxu0 0.0
      %576 = vmatprep.subr.mxu0 0.0
      %577 = vmatpush1.msra.mxu0 0.0
      %578 = vmatprep.subr.mxu0 0.0
      %579 = vmatpush1.msra.mxu0 0.0
      %580 = vmatprep.subr.mxu0 0.0
      %581 = vmatpush1.msra.mxu0 %v461
      %582 = vmatprep.subr.mxu0 0.0
      %583 = vmatpush1.msra.mxu0 %v460
      %584 = vmatprep.subr.mxu0 0.0
      %585 = vmatpush1.msra.mxu0 %v459
      %586 = vmatprep.subr.mxu0 0.0
      %587 = vmatpush1.msra.mxu0 %v458
      %588 = vmatprep.subr.mxu0 0.0
      %589 = vmatpush2.msra.mxu0 0.0
      %590 = vmatprep.subr.mxu0 0.0
      %591 = vmatpush2.msra.mxu0 0.0
      %592 = vmatprep.subr.mxu0 0.0
      %593 = vmatpush2.msra.mxu0 0.0
      %594 = vmatprep.subr.mxu0 0.0
      %595 = vmatpush2.msra.mxu0 0.0
      %596 = vmatprep.subr.mxu0 0.0
      %597 = vmatpush2.msra.mxu0 0.0
      %598 = vmatprep.subr.mxu0 0.0
      %599 = vmatpush2.msra.mxu0 0.0
      %600 = vmatprep.subr.mxu0 0.0
      %601 = vmatpush2.msra.mxu0 0.0
      %602 = vmatprep.subr.mxu0 0.0
      %603 = vmatpush2.msra.mxu0 0.0
      %604 = vmatprep.subr.mxu0 0.0
      %605 = vmatpush2.msra.mxu0 0.0
      %606 = vmatprep.subr.mxu0 0.0
      %607 = vmatpush2.msra.mxu0 0.0
      %608 = vmatprep.subr.mxu0 0.0
      %609 = vmatpush2.msra.mxu0 0.0
      %610 = vmatprep.subr.mxu0 0.0
      %611 = vmatpush2.msra.mxu0 0.0
      %612 = vmatprep.subr.mxu0 0.0
      %613 = vmatpush2.msra.mxu0 0.0
      %614 = vmatprep.subr.mxu0 0.0
      %615 = vmatpush2.msra.mxu0 0.0
      %616 = vmatprep.subr.mxu0 0.0
      %617 = vmatpush2.msra.mxu0 0.0
      %618 = vmatprep.subr.mxu0 0.0
      %619 = vmatpush2.msra.mxu0 0.0
      %620 = vmatprep.mubr.f32.mxu0 0.0
      %621 = vmatmul.mubr.f32.gmra.mxu0 %v554
      %v622 = vpop.f32.mrf.mxu0
      %v623 = vadd.f32 %v536, %v622
      %v624 = vpop.f32.mrf.mxu0
      %625 = vdwg.mxu0
      %v626 = vtanh.pop %v623
      %627 = vst.msk [vmem:[#allocation13] sm:$0x3] %vm443, %v626
    $region45: #{luong_attention.1} parent=1 // pred_fallthru
      _
    // Predicated region
    $region46: #{luong_attention.1} parent=1 // pred_check
      _
    $region47: #{luong_attention.1} parent=1 // pred_check_branch
      %629 = sbr.rel (0) target = $region49
    $region48: #{luong_attention.1} parent=1 // pred_region
      %s631 = ssub.s32 32, 32
      %632 = vsyncadd [#allocation7], %s631
      %s634 = sshll.u32 [#allocation13], 4
      %s635 = int_to_ptr.vmem [resolvable:$true] %s634
      %637 = dma.vmem_to_hbm [thread:$0]  %s635, 32, %s5, [#allocation7]
    $region49: #{luong_attention.1} parent=1 // pred_fallthru
      _
    // Predicated region
    $region50: #{luong_attention.1} parent=1 // pred_check
      _
    $region51: #{luong_attention.1} parent=1 // pred_check_branch
      %639 = sbr.rel (0) target = $region53
    $region52: #{luong_attention.1} parent=1 // pred_region
      %640 = dma.done [#allocation7], 32
    $region53: #{luong_attention.1} parent=1 // pred_fallthru
      _
    %641 = vsyncpa [#allocation6], 1
    %642 = vsyncpa [#allocation9], 1
    %643 = vsyncpa [#allocation12], 1
    %644 = vsyncpa [#allocation7], 1

</llo_original>
